<compile_context>
chip_gen: v7x
topology: tpu7x:2x2x1
jax: 0.10.0
libtpu: 0.0.40
codegen_flags: <defaults>
</compile_context>

<pallas_src>
import math

import jax
import jax.numpy as jnp
from jax import lax
from jax.experimental import pallas as pl
from jax.experimental.pallas import tpu as pltpu


_SQRT_HALF = 0.7071067811865476


def _gelu_exact(x):
    # PyTorch nn.GELU() default: exact erf-based GELU.
    # TODO(synk): on v6e/v7x a bf16 bias+GELU path (bf16 VPU/EUP) would cut the
    # dominant VALU work further; kept f32 here for exact-GELU semantics and
    # guaranteed lowering on all generations (v5e has no bf16 vector path).
    return 0.5 * x * (1.0 + lax.erf(x * _SQRT_HALF))


def _round_up(x, m):
    return (x + m - 1) // m * m


def _vmem_capacity_bytes():
    try:
        return int(pltpu.get_tpu_info().vmem_capacity_bytes)
    except Exception:
        return 64 * 1024 * 1024  # conservative fallback (v7x per-core VMEM)


def _vmem_estimate(tile_m, tile_h, d, h_pad, weights_resident, out_itemsize,
                   use_scratch):
    """Conservative VMEM footprint including compiler-materialized temporaries."""
    bf, f32 = 2, 4
    total = 2 * tile_m * d * f32                     # x tile (f32, double-buffered)
    if weights_resident:
        total += 2 * d * h_pad * bf                  # w1 full (count 2 buffers)
        total += 2 * h_pad * f32                     # b1 full
        total += 2 * h_pad * d * bf                  # w2 full
    else:
        total += 2 * d * tile_h * bf                 # w1 chunk (double-buffered)
        total += 2 * tile_h * f32                    # b1 chunk
        total += 2 * tile_h * d * bf                 # w2 chunk
    total += 2 * d * f32                             # b2 (tiny, constant index)
    total += 2 * tile_m * d * out_itemsize           # output tile
    if use_scratch:
        total += tile_m * d * f32                    # accumulator scratch
    total += tile_m * tile_h * (f32 + bf)            # f32 GELU interm. + bf16 copy
    total += tile_m * d * bf                         # in-kernel x bf16 cast
    return total


def _plan_tiles(M, D, H_pad, budget, out_itemsize, use_scratch, capacity):
    """Pick (tile_m, tile_h, weights_resident) under the VMEM budget."""
    M8 = _round_up(M, 8)
    tile_m_cap = 1024 if capacity >= 96 * (1 << 20) else 512
    tile_m0 = min(tile_m_cap, M8)
    if M8 >= 16:
        # Guarantee >= 2 steps on the parallel M axis (v7x has 2 TensorCores).
        tile_m0 = min(tile_m0, _round_up(pl.cdiv(M8, 2), 8))
    tile_m0 = max(8, (tile_m0 // 8) * 8)

    def fits(tm, th, resident):
        return _vmem_estimate(tm, th, D, H_pad, resident, out_itemsize,
                              use_scratch) <= budget

    best = (tile_m0, H_pad, False)
    for resident in (True, False):
        tm, th = tile_m0, H_pad
        # Shrink the hidden chunk first: halving tile_m would multiply weight
        # streaming and per-step overhead, halving tile_h only shrinks buffers.
        while not fits(tm, th, resident) and th > 256 and (th // 2) % 128 == 0:
            th //= 2
        while not fits(tm, th, resident) and tm > 256 and (tm // 2) % 8 == 0:
            tm //= 2
        while not fits(tm, th, resident) and th > 128 and (th // 2) % 128 == 0:
            th //= 2
        if fits(tm, th, resident):
            return tm, th, resident
        best = (tm, th, resident)
    return best  # best effort; vmem_limit gives headroom


def _make_kernel(slice_weights, tile_h, use_scratch):
    """slice_weights: weights are full-size VMEM-resident blocks and the
    H chunk is selected in-kernel with pl.ds (only needed when num_h > 1)."""

    def kernel(x_ref, w1_ref, b1_ref, w2_ref, b2_ref, o_ref, *scratch):
        acc_ref = scratch[0] if use_scratch else o_ref
        h_idx = pl.program_id(1)

        @pl.when(h_idx == 0)
        def _init():
            acc_ref[...] = jnp.zeros_like(acc_ref)

        if slice_weights:
            start = pl.multiple_of(h_idx * tile_h, tile_h)
            w1 = w1_ref[:, pl.ds(start, tile_h)]
            b1 = b1_ref[:, pl.ds(start, tile_h)]
            w2 = w2_ref[pl.ds(start, tile_h), :]
        else:
            w1 = w1_ref[...]
            b1 = b1_ref[...]
            w2 = w2_ref[...]

        # fc1 chunk on the MXU (bf16 x bf16 -> f32); bias add + GELU in f32.
        xb = x_ref[...].astype(jnp.bfloat16)
        h = jnp.dot(xb, w1, preferred_element_type=jnp.float32)
        h = _gelu_exact(h + b1)

        # TODO(synk): dropout is identity in eval mode; training-mode dropout
        # would build a keep-mask with pltpu.prng_seed + pltpu.prng_random_bits.

        # fc2 chunk-accumulate (bf16 MXU operands, f32 accumulation).
        acc_ref[...] += jnp.dot(h.astype(jnp.bfloat16), w2,
                                preferred_element_type=jnp.float32)

        @pl.when(h_idx == pl.num_programs(1) - 1)
        def _finish():
            if use_scratch:
                o_ref[...] = (acc_ref[...] + b2_ref[...]).astype(o_ref.dtype)
            else:
                o_ref[...] = acc_ref[...] + b2_ref[...]

    return kernel


def prepare_params(w1, b1, w2, b2, *, h_multiple=512):
    """One-time weight prep (outside the hot path): (in, out) layout, bf16 cast,
    and zero-padding of the hidden dim.  Padding is exact: GELU(0) = 0 and zero
    rows of w2 contribute nothing.  Biases stay f32."""
    H = w1.shape[0]
    H_pad = _round_up(H, h_multiple)
    w1_t = jnp.transpose(w1).astype(jnp.bfloat16)          # (D, H)
    w2_t = jnp.transpose(w2).astype(jnp.bfloat16)          # (H, D)
    b1_r = b1.astype(jnp.float32).reshape(1, -1)            # (1, H)
    b2_r = b2.astype(jnp.float32).reshape(1, -1)            # (1, D)
    if H_pad != H:
        w1_t = jnp.pad(w1_t, ((0, 0), (0, H_pad - H)))
        b1_r = jnp.pad(b1_r, ((0, 0), (0, H_pad - H)))
        w2_t = jnp.pad(w2_t, ((0, H_pad - H), (0, 0)))
    return w1_t, b1_r, w2_t, b2_r


def mlp_forward(x, w1_t, b1, w2_t, b2, *, vmem_budget_bytes=None):
    """x: (B, T, D).  w1_t: (D, H_pad) bf16, b1: (1, H_pad) f32,
    w2_t: (H_pad, D) bf16, b2: (1, D) f32 (from prepare_params)."""
    B, T, D = x.shape
    H_pad = w1_t.shape[1]
    M = B * T
    out_dtype = x.dtype
    use_scratch = (out_dtype != jnp.float32)   # f32 out: accumulate into o_ref
    out_itemsize = jnp.dtype(out_dtype).itemsize

    capacity = _vmem_capacity_bytes()
    if vmem_budget_bytes is None:
        vmem_budget_bytes = int(0.6 * capacity)
    vmem_limit_bytes = min(int(0.9 * capacity), vmem_budget_bytes + (16 << 20))

    tile_m, tile_h, weights_resident = _plan_tiles(
        M, D, H_pad, vmem_budget_bytes, out_itemsize, use_scratch, capacity)

    M_pad = _round_up(M, tile_m)
    x2 = x.reshape(M, D)                       # free view; bf16 cast is in-kernel
    if M_pad != M:
        x2 = jnp.pad(x2, ((0, M_pad - M), (0, 0)))   # padded rows sliced off

    num_m = M_pad // tile_m
    num_h = H_pad // tile_h
    grid = (num_m, num_h)
    slice_weights = weights_resident and num_h > 1

    if weights_resident:
        # Constant index_map: w1/w2/b1 are fetched from HBM exactly once.
        w1_spec = pl.BlockSpec((D, H_pad), lambda i, h: (0, 0))
        b1_spec = pl.BlockSpec((1, H_pad), lambda i, h: (0, 0))
        w2_spec = pl.BlockSpec((H_pad, D), lambda i, h: (0, 0))
    else:
        w1_spec = pl.BlockSpec((D, tile_h), lambda i, h: (0, h))
        b1_spec = pl.BlockSpec((1, tile_h), lambda i, h: (0, h))
        w2_spec = pl.BlockSpec((tile_h, D), lambda i, h: (h, 0))

    scratch_shapes = ([pltpu.VMEM((tile_m, D), jnp.float32)]
                      if use_scratch else [])

    cost = pl.CostEstimate(
        flops=2 * 2 * M_pad * D * H_pad,
        transcendentals=M_pad * H_pad,
        bytes_accessed=(x2.size * x2.dtype.itemsize
                        + w1_t.size * 2 + w2_t.size * 2
                        + b1.size * 4 + b2.size * 4
                        + M_pad * D * out_itemsize),
    )

    out = pl.pallas_call(
        _make_kernel(slice_weights, tile_h, use_scratch),
        out_shape=jax.ShapeDtypeStruct((M_pad, D), out_dtype),
        grid_spec=pltpu.PrefetchScalarGridSpec(
            num_scalar_prefetch=0,
            grid=grid,
            in_specs=[
                pl.BlockSpec((tile_m, D), lambda i, h: (i, 0)),
                w1_spec,
                b1_spec,
                w2_spec,
                pl.BlockSpec((1, D), lambda i, h: (0, 0)),
            ],
            out_specs=pl.BlockSpec((tile_m, D), lambda i, h: (i, 0)),
            scratch_shapes=scratch_shapes,
        ),
        compiler_params=pltpu.CompilerParams(
            dimension_semantics=("parallel", "arbitrary"),
            vmem_limit_bytes=vmem_limit_bytes,
        ),
        cost_estimate=cost,
    )(x2, w1_t, b1, w2_t, b2)

    if M_pad != M:
        out = out[:M]
    return out.reshape(B, T, D)


if __name__ == "__main__":
    # Config: n_embd=128 (lane-dense output), dropout=0.0 (identity), batch=2, seq=8.
    n_embd = 128
    hidden = 4 * n_embd
    B, T = 2, 8

    key = jax.random.PRNGKey(0)
    kx, k1, k2, k3, k4 = jax.random.split(key, 5)

    # Deterministic init mimicking nn.Linear default (uniform +/- 1/sqrt(fan_in)).
    bound1 = 1.0 / math.sqrt(n_embd)
    bound2 = 1.0 / math.sqrt(hidden)
    w1 = jax.random.uniform(k1, (hidden, n_embd), jnp.float32, -bound1, bound1)
    b1 = jax.random.uniform(k2, (hidden,), jnp.float32, -bound1, bound1)
    w2 = jax.random.uniform(k3, (n_embd, hidden), jnp.float32, -bound2, bound2)
    b2 = jax.random.uniform(k4, (n_embd,), jnp.float32, -bound2, bound2)

    x = jax.random.normal(kx, (B, T, n_embd), jnp.float32)

    # One-time parameter prep (transpose + bf16 cast + H padding), outside hot path.
    w1_t, b1_2, w2_t, b2_2 = prepare_params(w1, b1, w2, b2)

    fwd = jax.jit(mlp_forward)
    out = jax.block_until_ready(fwd(x, w1_t, b1_2, w2_t, b2_2))

    # bf16-aware pure-JAX reference (kernel runs matmuls in bf16 with f32 accum).
    xb = x.astype(jnp.bfloat16).astype(jnp.float32)
    w1b = w1.astype(jnp.bfloat16).astype(jnp.float32)
    w2b = w2.astype(jnp.bfloat16).astype(jnp.float32)
    h_ref = xb @ w1b.T + b1
    h_ref = 0.5 * h_ref * (1.0 + lax.erf(h_ref / jnp.sqrt(2.0)))
    h_ref = h_ref.astype(jnp.bfloat16).astype(jnp.float32)
    ref = (h_ref @ w2b.T + b2).reshape(B, T, n_embd)

    assert out.shape == (B, T, n_embd)
    assert jnp.allclose(out, ref, atol=5e-3, rtol=5e-3), float(
        jnp.max(jnp.abs(out - ref)))

    print("KERNEL_OK")
</pallas_src>

<mosaic_0001>
module attributes {stable_mosaic.version = 11 : i64} {
  func.func @kernel(%arg0: i32, %arg1: i32, %arg2: memref<8x128xf32, #tpu.memory_space<vmem>>, %arg3: memref<128x512xbf16, #tpu.memory_space<vmem>>, %arg4: memref<1x512xf32, #tpu.memory_space<vmem>>, %arg5: memref<512x128xbf16, #tpu.memory_space<vmem>>, %arg6: memref<1x128xf32, #tpu.memory_space<vmem>>, %arg7: memref<8x128xf32, #tpu.memory_space<vmem>>) attributes {dimension_semantics = [#tpu.dimension_semantics<parallel>, #tpu.dimension_semantics<arbitrary>], iteration_bounds = array<i64: 2, 1>, scalar_prefetch = 0 : i64, scratch_operands = 0 : i64, tpu.core_type = #tpu.core_type<tc>, window_params = [{transform_indices = @transform_0, window_bounds = array<i64: 8, 128>}, {pipeline_mode = #tpu.pipeline_mode<synchronous>, transform_indices = @transform_1, window_bounds = array<i64: 128, 512>}, {pipeline_mode = #tpu.pipeline_mode<synchronous>, transform_indices = @transform_2, window_bounds = array<i64: 1, 512>}, {pipeline_mode = #tpu.pipeline_mode<synchronous>, transform_indices = @transform_3, window_bounds = array<i64: 512, 128>}, {pipeline_mode = #tpu.pipeline_mode<synchronous>, transform_indices = @transform_4, window_bounds = array<i64: 1, 128>}, {transform_indices = @transform_5, window_bounds = array<i64: 8, 128>}]} {
    %c0_i32 = arith.constant 0 : i32
    %0 = arith.cmpi eq, %arg1, %c0_i32 : i32
    %1 = arith.extui %0 : i1 to i32
    %c0_i32_0 = arith.constant 0 : i32
    %2 = arith.cmpi ne, %1, %c0_i32_0 : i32
    scf.if %2 {
      %cst_18 = arith.constant 0.000000e+00 : f32
      %27 = vector.broadcast %cst_18 : f32 to vector<8x128xf32>
      %c0_19 = arith.constant 0 : index
      %c0_20 = arith.constant 0 : index
      %28 = vector.load %arg7[%c0_19, %c0_20] : memref<8x128xf32, #tpu.memory_space<vmem>>, vector<8x128xf32>
      tpu.vector_store %arg7[%c0_19, %c0_20], %27 {strides = array<i32>} : memref<8x128xf32, #tpu.memory_space<vmem>>, vector<8x128xf32>,
    } else {
    }
    %c0 = arith.constant 0 : index
    %c0_1 = arith.constant 0 : index
    %3 = vector.load %arg3[%c0, %c0_1] : memref<128x512xbf16, #tpu.memory_space<vmem>>, vector<128x512xbf16>
    %c0_2 = arith.constant 0 : index
    %c0_3 = arith.constant 0 : index
    %4 = vector.load %arg4[%c0_2, %c0_3] : memref<1x512xf32, #tpu.memory_space<vmem>>, vector<1x512xf32>
    %c0_4 = arith.constant 0 : index
    %c0_5 = arith.constant 0 : index
    %5 = vector.load %arg5[%c0_4, %c0_5] : memref<512x128xbf16, #tpu.memory_space<vmem>>, vector<512x128xbf16>
    %c0_6 = arith.constant 0 : index
    %c0_7 = arith.constant 0 : index
    %6 = vector.load %arg2[%c0_6, %c0_7] : memref<8x128xf32, #tpu.memory_space<vmem>>, vector<8x128xf32>
    %7 = arith.truncf %6 : vector<8x128xf32> to vector<8x128xbf16>
    %cst = arith.constant dense<0.000000e+00> : vector<8x512xf32>
    %8 = tpu.matmul %7, %3, %cst {dimension_numbers = #tpu.dot_dimension_numbers<[1], [0], [0], [1], [0, 0, 1, 1], [], []>} : vector<8x128xbf16>, vector<128x512xbf16>, vector<8x512xf32> -> vector<8x512xf32>
    %9 = vector.broadcast %4 : vector<1x512xf32> to vector<8x512xf32>
    %10 = arith.addf %8, %9 : vector<8x512xf32>
    %cst_8 = arith.constant 5.000000e-01 : f32
    %11 = vector.broadcast %cst_8 : f32 to vector<8x512xf32>
    %12 = arith.mulf %11, %10 : vector<8x512xf32>
    %cst_9 = arith.constant 0.707106769 : f32
    %13 = vector.broadcast %cst_9 : f32 to vector<8x512xf32>
    %14 = arith.mulf %10, %13 : vector<8x512xf32>
    %15 = math.erf %14 : vector<8x512xf32>
    %cst_10 = arith.constant 1.000000e+00 : f32
    %16 = vector.broadcast %cst_10 : f32 to vector<8x512xf32>
    %17 = arith.addf %16, %15 : vector<8x512xf32>
    %18 = arith.mulf %12, %17 : vector<8x512xf32>
    %c0_11 = arith.constant 0 : index
    %c0_12 = arith.constant 0 : index
    %19 = vector.load %arg7[%c0_11, %c0_12] : memref<8x128xf32, #tpu.memory_space<vmem>>, vector<8x128xf32>
    %20 = arith.truncf %18 : vector<8x512xf32> to vector<8x512xbf16>
    %cst_13 = arith.constant dense<0.000000e+00> : vector<8x128xf32>
    %21 = tpu.matmul %20, %5, %cst_13 {dimension_numbers = #tpu.dot_dimension_numbers<[1], [0], [0], [1], [0, 0, 1, 1], [], []>} : vector<8x512xbf16>, vector<512x128xbf16>, vector<8x128xf32> -> vector<8x128xf32>
    %22 = arith.addf %19, %21 : vector<8x128xf32>
    %c0_14 = arith.constant 0 : index
    %c0_15 = arith.constant 0 : index
    %23 = vector.load %arg7[%c0_14, %c0_15] : memref<8x128xf32, #tpu.memory_space<vmem>>, vector<8x128xf32>
    tpu.vector_store %arg7[%c0_14, %c0_15], %22 {strides = array<i32>} : memref<8x128xf32, #tpu.memory_space<vmem>>, vector<8x128xf32>,
    %c0_i32_16 = arith.constant 0 : i32
    %24 = arith.cmpi eq, %arg1, %c0_i32_16 : i32
    %25 = arith.extui %24 : i1 to i32
    %c0_i32_17 = arith.constant 0 : i32
    %26 = arith.cmpi ne, %25, %c0_i32_17 : i32
    scf.if %26 {
      %c0_18 = arith.constant 0 : index
      %c0_19 = arith.constant 0 : index
      %27 = vector.load %arg7[%c0_18, %c0_19] : memref<8x128xf32, #tpu.memory_space<vmem>>, vector<8x128xf32>
      %c0_20 = arith.constant 0 : index
      %c0_21 = arith.constant 0 : index
      %28 = vector.load %arg6[%c0_20, %c0_21] : memref<1x128xf32, #tpu.memory_space<vmem>>, vector<1x128xf32>
      %29 = vector.broadcast %28 : vector<1x128xf32> to vector<8x128xf32>
      %30 = arith.addf %27, %29 : vector<8x128xf32>
      %c0_22 = arith.constant 0 : index
      %c0_23 = arith.constant 0 : index
      %31 = vector.load %arg7[%c0_22, %c0_23] : memref<8x128xf32, #tpu.memory_space<vmem>>, vector<8x128xf32>
      tpu.vector_store %arg7[%c0_22, %c0_23], %30 {strides = array<i32>} : memref<8x128xf32, #tpu.memory_space<vmem>>, vector<8x128xf32>,
    } else {
    }
    return
  }
  func.func @transform_0(%arg0: i32, %arg1: i32) -> (i32, i32) {
    %c0_i32 = arith.constant 0 : i32
    %c0_i32_0 = arith.constant 0 : i32
    return %arg0, %c0_i32 : i32, i32
  }
  func.func @transform_1(%arg0: i32, %arg1: i32) -> (i32, i32) {
    %c0_i32 = arith.constant 0 : i32
    %c0_i32_0 = arith.constant 0 : i32
    %c0_i32_1 = arith.constant 0 : i32
    return %c0_i32, %c0_i32_0 : i32, i32
  }
  func.func @transform_2(%arg0: i32, %arg1: i32) -> (i32, i32) {
    %c0_i32 = arith.constant 0 : i32
    %c0_i32_0 = arith.constant 0 : i32
    %c0_i32_1 = arith.constant 0 : i32
    return %c0_i32, %c0_i32_0 : i32, i32
  }
  func.func @transform_3(%arg0: i32, %arg1: i32) -> (i32, i32) {
    %c0_i32 = arith.constant 0 : i32
    %c0_i32_0 = arith.constant 0 : i32
    %c0_i32_1 = arith.constant 0 : i32
    return %c0_i32, %c0_i32_0 : i32, i32
  }
  func.func @transform_4(%arg0: i32, %arg1: i32) -> (i32, i32) {
    %c0_i32 = arith.constant 0 : i32
    %c0_i32_0 = arith.constant 0 : i32
    %c0_i32_1 = arith.constant 0 : i32
    return %c0_i32, %c0_i32_0 : i32, i32
  }
  func.func @transform_5(%arg0: i32, %arg1: i32) -> (i32, i32) {
    %c0_i32 = arith.constant 0 : i32
    %c0_i32_0 = arith.constant 0 : i32
    return %arg0, %c0_i32 : i32, i32
  }
}

</mosaic_0001>

<llo_original>
// kernel: mlp_forward.1
$region0: #{mlp_forward.1}
  #allocation0 [shape = 'u32[]', space=smem, size = 0x4, offset = 0x4, fixed_abs, tag = 'smem constant byte address 0x4 - core index']
  #allocation1 [shape = 'u32[144,128]{1,0:T(1,128)}', space=vmem, size = 0x12000, scoped, tag = 'internal scratch']
  %s0 = inlined_call_operand.hbm [shape: f32[16,128], index: 0, kind: input, shape index: {}]
  %s1 = inlined_call_operand.hbm [shape: bf16[128,512], index: 1, kind: input, shape index: {}]
  %s2 = inlined_call_operand.vmem [shape: f32[1,512], index: 2, kind: input, shape index: {}]
  %s3 = inlined_call_operand.hbm [shape: bf16[512,128], index: 3, kind: input, shape index: {}]
  %s4 = inlined_call_operand.vmem [shape: f32[1,128], index: 4, kind: input, shape index: {}]
  %s5 = inlined_call_operand.hbm [shape: f32[16,128], index: 5, kind: output, shape index: {}]
  %s6 = sld [smem:[#allocation0]]
  $region73: #{mlp_forward.1} parent=0
    _
  %s8 = ssub.s32 1, %s6
  %s9 = scalar_select 0, %s8, %s6
  $region1: #{mlp_forward.1} parent=0
    #allocation2 [shape = 'u8[8192]{0}', space=vmem, size = 0x2000, scoped, tag = 'input window, operand 0']
    #allocation3 [shape = 's32[2]{0}', space=sflag, size = 0x8, scoped, tag = 'scoped memory for mlp_forward.1']
    #allocation4 [shape = 's32[2]{0}', space=sflag, size = 0x8, scoped, tag = 'scoped memory for mlp_forward.1']
    #allocation5 [shape = 'u8[131072]{0}', space=vmem, size = 0x20000, scoped, tag = 'input window, operand 1, single buffered']
    #allocation6 [shape = 's32[1]{0}', space=sflag, size = 0x4, scoped, tag = 'scoped memory for mlp_forward.1']
    #allocation7 [shape = 'u8[131072]{0}', space=vmem, size = 0x20000, scoped, tag = 'input window, operand 3, single buffered']
    #allocation8 [shape = 'u8[8192]{0}', space=vmem, size = 0x2000, scoped, tag = 'output window, operand 0']
    %10 = vsyncpa [#allocation3], 0
    %s11 = scalar_lea.sflag [#allocation3], 1
    %12 = vsyncpa %s11, 0
    %13 = vsyncpa [#allocation6], 0
    %14 = vsyncpa [#allocation4], 0
    %s15 = scalar_lea.sflag [#allocation4], 1
    %16 = vsyncpa %s15, 0
    loop: start=0, step=1, limit=4
    $region2: #{mlp_forward.1} parent=1 // loop_pre_header
      _
    $region3: #{mlp_forward.1} parent=1 // loop_header
      %s18 = sphi 0, %s22
      %p19 = scmp.ge.s32.totalorder %s18, 4
      %s25 = sphi 0, %s37
      %s26 = sphi 0, %s33
      %s27 = sphi 0, %s25
      %s28 = sphi 0, %s26
      %s29 = sphi 0, %s27
      %s30 = sphi 0, %s28
      %s40 = sphi 0, %s42
      %s43 = sphi 0, %s40
      %s44 = sphi 0, %s43
      %s60 = sphi 0, %s44
      %s64 = sphi 0, %s64
      %s66 = sphi 0, %s64
      %s67 = sphi 0, %s66
      %s81 = sphi 0, %s67
      %s85 = sphi 0, %s85
      %s87 = sphi 0, %s85
      %s88 = sphi 0, %s87
      %s102 = sphi 0, %s88
      %s106 = sphi 0, %s106
      %s108 = sphi 0, %s106
      %s109 = sphi 0, %s108
      %s123 = sphi 0, %s109
      %s127 = sphi 0, %s127
      %s129 = sphi 0, %s127
      %s130 = sphi 0, %s129
      %s144 = sphi 0, %s130
      %s150 = sphi 0, %s152
      %s153 = sphi 0, %s150
      %s154 = sphi 0, %s153
      %s170 = sphi 0, %s154
    $region4: #{mlp_forward.1} parent=1 // loop_header_branch
      %21 = sbr.rel (%p19) target = $region8
    $region5: #{mlp_forward.1} parent=1 // loop_body
      %s23 = ssub.s32 %s18, 1
      %s24 = ssub.s32 %s18, 2
      %s31 = sadd.s32 1, %s26
      %p32 = scmp.ge.s32.totalorder %s31, 1
      %s33 = scalar_select %p32, 0, %s31
      %s34 = sadd.s32 1, %s25
      %s35 = scalar_select %p32, %s34, %s25
      %p36 = scmp.ge.s32.totalorder %s35, 2
      %s37 = scalar_select %p36, 0, %s35
      %s38 = ssub.s32 %s25, %s37
      %p39 = scmp.eq.s32.totalorder %s38, 0
      %s41 = sadd.s32 %s40, 1
      %s42 = scalar_select %p39, %s40, %s41
      %p45 = pneg %p39
      %p46 = scmp.eq.s32.totalorder %s18, 1
      %p47 = por %p45, %p46
      %p48 = scmp.ne.s32.totalorder %s40, %s43
      %p49 = scmp.eq.s32.totalorder %s18, 0
      %p50 = por %p48, %p49
      %p51 = scmp.ne.s32.totalorder %s40, %s43
      %p52 = scmp.eq.s32.totalorder %s23, 1
      %p53 = por %p51, %p52
      %p54 = scmp.ne.s32.totalorder %s43, %s44
      %p55 = scmp.eq.s32.totalorder %s23, 0
      %p56 = por %p54, %p55
      %p57 = scmp.ne.s32.totalorder %s43, %s44
      %p58 = scmp.eq.s32.totalorder %s24, 1
      %p59 = por %p57, %p58
      %p61 = scmp.ne.s32.totalorder %s44, %s60
      %p62 = scmp.eq.s32.totalorder %s24, 0
      %p63 = por %p61, %p62
      %s65 = sadd.s32 %s64, 1
      %p68 = scmp.eq.s32.totalorder %s18, 1
      %p69 = scmp.ne.s32.totalorder %s64, %s66
      %p70 = scmp.eq.s32.totalorder %s18, 0
      %p71 = por %p69, %p70
      %p72 = scmp.ne.s32.totalorder %s64, %s66
      %p73 = scmp.eq.s32.totalorder %s23, 1
      %p74 = por %p72, %p73
      %p75 = scmp.ne.s32.totalorder %s66, %s67
      %p76 = scmp.eq.s32.totalorder %s23, 0
      %p77 = por %p75, %p76
      %p78 = scmp.ne.s32.totalorder %s66, %s67
      %p79 = scmp.eq.s32.totalorder %s24, 1
      %p80 = por %p78, %p79
      %p82 = scmp.ne.s32.totalorder %s67, %s81
      %p83 = scmp.eq.s32.totalorder %s24, 0
      %p84 = por %p82, %p83
      %s86 = sadd.s32 %s85, 1
      %p89 = scmp.eq.s32.totalorder %s18, 1
      %p90 = scmp.ne.s32.totalorder %s85, %s87
      %p91 = scmp.eq.s32.totalorder %s18, 0
      %p92 = por %p90, %p91
      %p93 = scmp.ne.s32.totalorder %s85, %s87
      %p94 = scmp.eq.s32.totalorder %s23, 1
      %p95 = por %p93, %p94
      %p96 = scmp.ne.s32.totalorder %s87, %s88
      %p97 = scmp.eq.s32.totalorder %s23, 0
      %p98 = por %p96, %p97
      %p99 = scmp.ne.s32.totalorder %s87, %s88
      %p100 = scmp.eq.s32.totalorder %s24, 1
      %p101 = por %p99, %p100
      %p103 = scmp.ne.s32.totalorder %s88, %s102
      %p104 = scmp.eq.s32.totalorder %s24, 0
      %p105 = por %p103, %p104
      %s107 = sadd.s32 %s106, 1
      %p110 = scmp.eq.s32.totalorder %s18, 1
      %p111 = scmp.ne.s32.totalorder %s106, %s108
      %p112 = scmp.eq.s32.totalorder %s18, 0
      %p113 = por %p111, %p112
      %p114 = scmp.ne.s32.totalorder %s106, %s108
      %p115 = scmp.eq.s32.totalorder %s23, 1
      %p116 = por %p114, %p115
      %p117 = scmp.ne.s32.totalorder %s108, %s109
      %p118 = scmp.eq.s32.totalorder %s23, 0
      %p119 = por %p117, %p118
      %p120 = scmp.ne.s32.totalorder %s108, %s109
      %p121 = scmp.eq.s32.totalorder %s24, 1
      %p122 = por %p120, %p121
      %p124 = scmp.ne.s32.totalorder %s109, %s123
      %p125 = scmp.eq.s32.totalorder %s24, 0
      %p126 = por %p124, %p125
      %s128 = sadd.s32 %s127, 1
      %p131 = scmp.eq.s32.totalorder %s18, 1
      %p132 = scmp.ne.s32.totalorder %s127, %s129
      %p133 = scmp.eq.s32.totalorder %s18, 0
      %p134 = por %p132, %p133
      %p135 = scmp.ne.s32.totalorder %s127, %s129
      %p136 = scmp.eq.s32.totalorder %s23, 1
      %p137 = por %p135, %p136
      %p138 = scmp.ne.s32.totalorder %s129, %s130
      %p139 = scmp.eq.s32.totalorder %s23, 0
      %p140 = por %p138, %p139
      %p141 = scmp.ne.s32.totalorder %s129, %s130
      %p142 = scmp.eq.s32.totalorder %s24, 1
      %p143 = por %p141, %p142
      %p145 = scmp.ne.s32.totalorder %s130, %s144
      %p146 = scmp.eq.s32.totalorder %s24, 0
      %p147 = por %p145, %p146
      %s148 = ssub.s32 %s25, %s37
      %p149 = scmp.eq.s32.totalorder %s148, 0
      %s151 = sadd.s32 %s150, 1
      %s152 = scalar_select %p149, %s150, %s151
      %p155 = pneg %p149
      %p156 = scmp.eq.s32.totalorder %s18, 1
      %p157 = por %p155, %p156
      %p158 = scmp.ne.s32.totalorder %s150, %s153
      %p159 = scmp.eq.s32.totalorder %s18, 0
      %p160 = por %p158, %p159
      %p161 = scmp.ne.s32.totalorder %s150, %s153
      %p162 = scmp.eq.s32.totalorder %s23, 1
      %p163 = por %p161, %p162
      %p164 = scmp.ne.s32.totalorder %s153, %s154
      %p165 = scmp.eq.s32.totalorder %s23, 0
      %p166 = por %p164, %p165
      %p167 = scmp.ne.s32.totalorder %s153, %s154
      %p168 = scmp.eq.s32.totalorder %s24, 1
      %p169 = por %p167, %p168
      %p171 = scmp.ne.s32.totalorder %s154, %s170
      %p172 = scmp.eq.s32.totalorder %s24, 0
      %p173 = por %p171, %p172
      %p174 = scmp.le.s32.totalorder 1, %s18
      %p175 = scmp.lt.s32.totalorder %s18, 3
      %p176 = pnand %p174, %p175
      %p177 = pneg %p176
      // Predicated region
      $region9: #{mlp_forward.1} parent=5 // pred_check
        _
      $region10: #{mlp_forward.1} parent=5 // pred_check_branch
        %179 = sbr.rel (%p176) target = $region12
      $region11: #{mlp_forward.1} parent=5 // pred_region
        %s180 = ssub.s32 %s18, 1
        // Predicated region
        $region13: #{mlp_forward.1} parent=11 // pred_check
          %p181 = pneg %p77
        $region14: #{mlp_forward.1} parent=11 // pred_check_branch
          %183 = sbr.rel (%p181) target = $region16
        $region15: #{mlp_forward.1} parent=11 // pred_region
          %s185 = ssub.s32 4096, 4096
          %186 = vsyncadd [#allocation6], %s185
          %s187 = sshll.u32 [#allocation5], 4
          %s188 = int_to_ptr.vmem [resolvable:$true] %s187
          %193 = dma.hbm_to_vmem [thread:$0]  %s1, 4096, %s188, [#allocation6], 256, 256, 16
        $region16: #{mlp_forward.1} parent=11 // pred_fallthru
          _
        // Predicated region
        $region17: #{mlp_forward.1} parent=11 // pred_check
          %p194 = pneg %p98
        $region18: #{mlp_forward.1} parent=11 // pred_check_branch
          %196 = sbr.rel (%p194) target = $region20
        $region19: #{mlp_forward.1} parent=11 // pred_region
          _
        $region20: #{mlp_forward.1} parent=11 // pred_fallthru
          _
        // Predicated region
        $region21: #{mlp_forward.1} parent=11 // pred_check
          %p197 = pneg %p119
        $region22: #{mlp_forward.1} parent=11 // pred_check_branch
          %199 = sbr.rel (%p197) target = $region24
        $region23: #{mlp_forward.1} parent=11 // pred_region
          %s201 = ssub.s32 4096, 4096
          %202 = vsyncadd [#allocation6], %s201
          %s203 = sshll.u32 [#allocation7], 4
          %s204 = int_to_ptr.vmem [resolvable:$true] %s203
          %209 = dma.hbm_to_vmem [thread:$0]  %s3, 4096, %s204, [#allocation6], 64, 64, 4
        $region24: #{mlp_forward.1} parent=11 // pred_fallthru
          _
        // Predicated region
        $region25: #{mlp_forward.1} parent=11 // pred_check
          %p210 = pneg %p140
        $region26: #{mlp_forward.1} parent=11 // pred_check_branch
          %212 = sbr.rel (%p210) target = $region28
        $region27: #{mlp_forward.1} parent=11 // pred_region
          _
        $region28: #{mlp_forward.1} parent=11 // pred_fallthru
          _
      $region12: #{mlp_forward.1} parent=5 // pred_fallthru
        _
      %p213 = scmp.lt.s32.totalorder %s18, 2
      // Predicated region
      $region29: #{mlp_forward.1} parent=5 // pred_check
        %p214 = pneg %p213
      $region30: #{mlp_forward.1} parent=5 // pred_check_branch
        %216 = sbr.rel (%p214) target = $region32
      $region31: #{mlp_forward.1} parent=5 // pred_region
        // Predicated region
        $region33: #{mlp_forward.1} parent=31 // pred_check
          %p217 = pneg %p50
        $region34: #{mlp_forward.1} parent=31 // pred_check_branch
          %219 = sbr.rel (%p217) target = $region36
        $region35: #{mlp_forward.1} parent=31 // pred_region
          %s220 = sand.u32 %s40, 1
          %s221 = scalar_lea.sflag [#allocation3], %s220
          %s222 = sand.u32 %s40, 1
          %s223 = smul.addr %s222, 8
          %s224 = scalar_lea.vmem [#allocation2], %s223
          %s226 = ssub.s32 128, 128
          %227 = vsyncadd %s221, %s226
          %s228 = smul.addr %s25, 128
          %s229 = scalar_lea.hbm %s0, %s228
          %s231 = sshll.u32 %s224, 4
          %s232 = int_to_ptr.vmem [resolvable:$true] %s231
          %234 = dma.hbm_to_vmem [thread:$0]  %s229, 128, %s232, %s221
        $region36: #{mlp_forward.1} parent=31 // pred_fallthru
          _
      $region32: #{mlp_forward.1} parent=5 // pred_fallthru
        _
      %p235 = scmp.le.s32.totalorder 1, %s18
      %p236 = scmp.lt.s32.totalorder %s18, 3
      %p237 = pnand %p235, %p236
      %p238 = pneg %p237
      // Predicated region
      $region37: #{mlp_forward.1} parent=5 // pred_check
        _
      $region38: #{mlp_forward.1} parent=5 // pred_check_branch
        %240 = sbr.rel (%p237) target = $region40
      $region39: #{mlp_forward.1} parent=5 // pred_region
        %s241 = ssub.s32 %s18, 1
        %s242 = sand.u32 %s43, 1
        %s243 = scalar_lea.sflag [#allocation3], %s242
        %s244 = sand.u32 %s43, 1
        %s245 = smul.addr %s244, 8
        %s246 = scalar_lea.vmem [#allocation2], %s245
        // Predicated region
        $region41: #{mlp_forward.1} parent=39 // pred_check
          %p247 = pneg %p56
        $region42: #{mlp_forward.1} parent=39 // pred_check_branch
          %249 = sbr.rel (%p247) target = $region44
        $region43: #{mlp_forward.1} parent=39 // pred_region
          %250 = dma.done %s243, 128
        $region44: #{mlp_forward.1} parent=39 // pred_fallthru
          _
        // Predicated region
        $region45: #{mlp_forward.1} parent=39 // pred_check
          %p251 = pneg %p77
        $region46: #{mlp_forward.1} parent=39 // pred_check_branch
          %253 = sbr.rel (%p251) target = $region48
        $region47: #{mlp_forward.1} parent=39 // pred_region
          %254 = dma.done [#allocation6], 4096
        $region48: #{mlp_forward.1} parent=39 // pred_fallthru
          _
        // Predicated region
        $region49: #{mlp_forward.1} parent=39 // pred_check
          %p255 = pneg %p119
        $region50: #{mlp_forward.1} parent=39 // pred_check_branch
          %257 = sbr.rel (%p255) target = $region52
        $region51: #{mlp_forward.1} parent=39 // pred_region
          %258 = dma.done [#allocation6], 4096
        $region52: #{mlp_forward.1} parent=39 // pred_fallthru
          _
        %s259 = sand.u32 %s43, 1
        %s260 = scalar_lea.sflag [#allocation3], %s259
        %s261 = sand.u32 %s43, 1
        %s262 = smul.addr %s261, 8
        %s263 = scalar_lea.vmem [#allocation2], %s262
        %p264 = pneg %p56
        %p265 = pneg %p53
        %p266 = pneg %p77
        %p267 = pneg %p74
        %p268 = pneg %p98
        %p269 = pneg %p95
        %p270 = pneg %p119
        %p271 = pneg %p116
        %p272 = pneg %p140
        %p273 = pneg %p137
        %p274 = pneg %p166
        %p275 = pneg %p163
        %s276 = sand.u32 %s153, 1
        %s277 = scalar_lea.sflag [#allocation4], %s276
        %s278 = sand.u32 %s153, 1
        %s279 = smul.addr %s278, 8
        %s280 = scalar_lea.vmem [#allocation8], %s279
        %p282 = scmp.eq.s32.totalorder %s28, 0
        // Predicated region
        $region53: #{mlp_forward.1} parent=39 // pred_check
          %p283 = pneg %p282
        $region54: #{mlp_forward.1} parent=39 // pred_check_branch
          %285 = sbr.rel (%p283) target = $region56
        $region55: #{mlp_forward.1} parent=39 // pred_region
          %286 = vst [vmem:[%s280] sm:$0xff] 0.0
        $region56: #{mlp_forward.1} parent=39 // pred_fallthru
          _
        %v287 = vld [vmem:[#allocation5] sm:$0xff]
        %v288 = vld [vmem:[#allocation5 + $0x8] sm:$0xff]
        %v289 = vld [vmem:[#allocation5 + $0x10] sm:$0xff]
        %v290 = vld [vmem:[#allocation5 + $0x18] sm:$0xff]
        %v291 = vld [vmem:[#allocation5 + $0x20] sm:$0xff]
        %v292 = vld [vmem:[#allocation5 + $0x28] sm:$0xff]
        %v293 = vld [vmem:[#allocation5 + $0x30] sm:$0xff]
        %v294 = vld [vmem:[#allocation5 + $0x38] sm:$0xff]
        %v295 = vld [vmem:[#allocation5 + $0x40] sm:$0xff]
        %v296 = vld [vmem:[#allocation5 + $0x48] sm:$0xff]
        %v297 = vld [vmem:[#allocation5 + $0x50] sm:$0xff]
        %v298 = vld [vmem:[#allocation5 + $0x58] sm:$0xff]
        %v299 = vld [vmem:[#allocation5 + $0x60] sm:$0xff]
        %v300 = vld [vmem:[#allocation5 + $0x68] sm:$0xff]
        %v301 = vld [vmem:[#allocation5 + $0x70] sm:$0xff]
        %v302 = vld [vmem:[#allocation5 + $0x78] sm:$0xff]
        %v303 = vld [vmem:[#allocation5 + $0x80] sm:$0xff]
        %v304 = vld [vmem:[#allocation5 + $0x88] sm:$0xff]
        %v305 = vld [vmem:[#allocation5 + $0x90] sm:$0xff]
        %v306 = vld [vmem:[#allocation5 + $0x98] sm:$0xff]
        %v307 = vld [vmem:[#allocation5 + $0xa0] sm:$0xff]
        %v308 = vld [vmem:[#allocation5 + $0xa8] sm:$0xff]
        %v309 = vld [vmem:[#allocation5 + $0xb0] sm:$0xff]
        %v310 = vld [vmem:[#allocation5 + $0xb8] sm:$0xff]
        %v311 = vld [vmem:[#allocation5 + $0xc0] sm:$0xff]
        %v312 = vld [vmem:[#allocation5 + $0xc8] sm:$0xff]
        %v313 = vld [vmem:[#allocation5 + $0xd0] sm:$0xff]
        %v314 = vld [vmem:[#allocation5 + $0xd8] sm:$0xff]
        %v315 = vld [vmem:[#allocation5 + $0xe0] sm:$0xff]
        %v316 = vld [vmem:[#allocation5 + $0xe8] sm:$0xff]
        %v317 = vld [vmem:[#allocation5 + $0xf0] sm:$0xff]
        %v318 = vld [vmem:[#allocation5 + $0xf8] sm:$0xff]
        %v319 = vld [vmem:[%s2] sm:$0xf]
        %v320 = vld [vmem:[#allocation7] sm:$0xf]
        %v321 = vld [vmem:[#allocation7 + $0x4] sm:$0xf]
        %v322 = vld [vmem:[#allocation7 + $0x8] sm:$0xf]
        %v323 = vld [vmem:[#allocation7 + $0xc] sm:$0xf]
        %v324 = vld [vmem:[#allocation7 + $0x10] sm:$0xf]
        %v325 = vld [vmem:[#allocation7 + $0x14] sm:$0xf]
        %v326 = vld [vmem:[#allocation7 + $0x18] sm:$0xf]
        %v327 = vld [vmem:[#allocation7 + $0x1c] sm:$0xf]
        %v328 = vld [vmem:[#allocation7 + $0x20] sm:$0xf]
        %v329 = vld [vmem:[#allocation7 + $0x24] sm:$0xf]
        %v330 = vld [vmem:[#allocation7 + $0x28] sm:$0xf]
        %v331 = vld [vmem:[#allocation7 + $0x2c] sm:$0xf]
        %v332 = vld [vmem:[#allocation7 + $0x30] sm:$0xf]
        %v333 = vld [vmem:[#allocation7 + $0x34] sm:$0xf]
        %v334 = vld [vmem:[#allocation7 + $0x38] sm:$0xf]
        %v335 = vld [vmem:[#allocation7 + $0x3c] sm:$0xf]
        %v336 = vld [vmem:[#allocation7 + $0x40] sm:$0xf]
        %v337 = vld [vmem:[#allocation7 + $0x44] sm:$0xf]
        %v338 = vld [vmem:[#allocation7 + $0x48] sm:$0xf]
        %v339 = vld [vmem:[#allocation7 + $0x4c] sm:$0xf]
        %v340 = vld [vmem:[#allocation7 + $0x50] sm:$0xf]
        %v341 = vld [vmem:[#allocation7 + $0x54] sm:$0xf]
        %v342 = vld [vmem:[#allocation7 + $0x58] sm:$0xf]
        %v343 = vld [vmem:[#allocation7 + $0x5c] sm:$0xf]
        %v344 = vld [vmem:[#allocation7 + $0x60] sm:$0xf]
        %v345 = vld [vmem:[#allocation7 + $0x64] sm:$0xf]
        %v346 = vld [vmem:[#allocation7 + $0x68] sm:$0xf]
        %v347 = vld [vmem:[#allocation7 + $0x6c] sm:$0xf]
        %v348 = vld [vmem:[#allocation7 + $0x70] sm:$0xf]
        %v349 = vld [vmem:[#allocation7 + $0x74] sm:$0xf]
        %v350 = vld [vmem:[#allocation7 + $0x78] sm:$0xf]
        %v351 = vld [vmem:[#allocation7 + $0x7c] sm:$0xf]
        %v352 = vld [vmem:[#allocation7 + $0x80] sm:$0xf]
        %v353 = vld [vmem:[#allocation7 + $0x84] sm:$0xf]
        %v354 = vld [vmem:[#allocation7 + $0x88] sm:$0xf]
        %v355 = vld [vmem:[#allocation7 + $0x8c] sm:$0xf]
        %v356 = vld [vmem:[#allocation7 + $0x90] sm:$0xf]
        %v357 = vld [vmem:[#allocation7 + $0x94] sm:$0xf]
        %v358 = vld [vmem:[#allocation7 + $0x98] sm:$0xf]
        %v359 = vld [vmem:[#allocation7 + $0x9c] sm:$0xf]
        %v360 = vld [vmem:[#allocation7 + $0xa0] sm:$0xf]
        %v361 = vld [vmem:[#allocation7 + $0xa4] sm:$0xf]
        %v362 = vld [vmem:[#allocation7 + $0xa8] sm:$0xf]
        %v363 = vld [vmem:[#allocation7 + $0xac] sm:$0xf]
        %v364 = vld [vmem:[#allocation7 + $0xb0] sm:$0xf]
        %v365 = vld [vmem:[#allocation7 + $0xb4] sm:$0xf]
        %v366 = vld [vmem:[#allocation7 + $0xb8] sm:$0xf]
        %v367 = vld [vmem:[#allocation7 + $0xbc] sm:$0xf]
        %v368 = vld [vmem:[#allocation7 + $0xc0] sm:$0xf]
        %v369 = vld [vmem:[#allocation7 + $0xc4] sm:$0xf]
        %v370 = vld [vmem:[#allocation7 + $0xc8] sm:$0xf]
        %v371 = vld [vmem:[#allocation7 + $0xcc] sm:$0xf]
        %v372 = vld [vmem:[#allocation7 + $0xd0] sm:$0xf]
        %v373 = vld [vmem:[#allocation7 + $0xd4] sm:$0xf]
        %v374 = vld [vmem:[#allocation7 + $0xd8] sm:$0xf]
        %v375 = vld [vmem:[#allocation7 + $0xdc] sm:$0xf]
        %v376 = vld [vmem:[#allocation7 + $0xe0] sm:$0xf]
        %v377 = vld [vmem:[#allocation7 + $0xe4] sm:$0xf]
        %v378 = vld [vmem:[#allocation7 + $0xe8] sm:$0xf]
        %v379 = vld [vmem:[#allocation7 + $0xec] sm:$0xf]
        %v380 = vld [vmem:[#allocation7 + $0xf0] sm:$0xf]
        %v381 = vld [vmem:[#allocation7 + $0xf4] sm:$0xf]
        %v382 = vld [vmem:[#allocation7 + $0xf8] sm:$0xf]
        %v383 = vld [vmem:[#allocation7 + $0xfc] sm:$0xf]
        %v384 = vld [vmem:[%s246] sm:$0xff]
        %v385 = vpack.c.bf16 %v384, %v384
        %v387 = vlaneseq
        %v388 = vshrl.u32 %v387, 7
        %v389 = vsub.s32 0, %v388
        %v390 = vrot.slane %v319, %v389
        %v391 = vlaneseq
        %v392 = vshrl.u32 %v391, 7
        %v393 = vsub.s32 1, %v392
        %v394 = vrot.slane %v319, %v393
        %v395 = vlaneseq
        %v396 = vshrl.u32 %v395, 7
        %v397 = vsub.s32 2, %v396
        %v398 = vrot.slane %v319, %v397
        %v399 = vlaneseq
        %v400 = vshrl.u32 %v399, 7
        %v401 = vsub.s32 3, %v400
        %v402 = vrot.slane %v319, %v401
        %v439 = vunpack.c.l.b16 %v287
        %v440 = vunpack.c.h.b16 %v287
        %v441 = vunpack.c.l.b16 %v288
        %v442 = vunpack.c.h.b16 %v288
        %v443 = vunpack.c.l.b16 %v289
        %v444 = vunpack.c.h.b16 %v289
        %v445 = vunpack.c.l.b16 %v290
        %v446 = vunpack.c.h.b16 %v290
        %v447 = vunpack.c.l.b16 %v291
        %v448 = vunpack.c.h.b16 %v291
        %v449 = vunpack.c.l.b16 %v292
        %v450 = vunpack.c.h.b16 %v292
        %v451 = vunpack.c.l.b16 %v293
        %v452 = vunpack.c.h.b16 %v293
        %v453 = vunpack.c.l.b16 %v294
        %v454 = vunpack.c.h.b16 %v294
        %v455 = vunpack.c.l.b16 %v295
        %v456 = vunpack.c.h.b16 %v295
        %v457 = vunpack.c.l.b16 %v296
        %v458 = vunpack.c.h.b16 %v296
        %v459 = vunpack.c.l.b16 %v297
        %v460 = vunpack.c.h.b16 %v297
        %v461 = vunpack.c.l.b16 %v298
        %v462 = vunpack.c.h.b16 %v298
        %v463 = vunpack.c.l.b16 %v299
        %v464 = vunpack.c.h.b16 %v299
        %v465 = vunpack.c.l.b16 %v300
        %v466 = vunpack.c.h.b16 %v300
        %v467 = vunpack.c.l.b16 %v301
        %v468 = vunpack.c.h.b16 %v301
        %v469 = vunpack.c.l.b16 %v302
        %v470 = vunpack.c.h.b16 %v302
        %v471 = vunpack.c.l.b16 %v303
        %v472 = vunpack.c.h.b16 %v303
        %v473 = vunpack.c.l.b16 %v304
        %v474 = vunpack.c.h.b16 %v304
        %v475 = vunpack.c.l.b16 %v305
        %v476 = vunpack.c.h.b16 %v305
        %v477 = vunpack.c.l.b16 %v306
        %v478 = vunpack.c.h.b16 %v306
        %v479 = vunpack.c.l.b16 %v307
        %v480 = vunpack.c.h.b16 %v307
        %v481 = vunpack.c.l.b16 %v308
        %v482 = vunpack.c.h.b16 %v308
        %v483 = vunpack.c.l.b16 %v309
        %v484 = vunpack.c.h.b16 %v309
        %v485 = vunpack.c.l.b16 %v310
        %v486 = vunpack.c.h.b16 %v310
        %v487 = vunpack.c.l.b16 %v311
        %v488 = vunpack.c.h.b16 %v311
        %v489 = vunpack.c.l.b16 %v312
        %v490 = vunpack.c.h.b16 %v312
        %v491 = vunpack.c.l.b16 %v313
        %v492 = vunpack.c.h.b16 %v313
        %v493 = vunpack.c.l.b16 %v314
        %v494 = vunpack.c.h.b16 %v314
        %v495 = vunpack.c.l.b16 %v315
        %v496 = vunpack.c.h.b16 %v315
        %v497 = vunpack.c.l.b16 %v316
        %v498 = vunpack.c.h.b16 %v316
        %v499 = vunpack.c.l.b16 %v317
        %v500 = vunpack.c.h.b16 %v317
        %v501 = vunpack.c.l.b16 %v318
        %v502 = vunpack.c.h.b16 %v318
        %v503 = vpack.c.b16 %v443, %v439
        %v504 = vpack.c.b16 %v444, %v440
        %v505 = vpack.c.b16 %v445, %v441
        %v506 = vpack.c.b16 %v446, %v442
        %v507 = vpack.c.b16 %v451, %v447
        %v508 = vpack.c.b16 %v452, %v448
        %v509 = vpack.c.b16 %v453, %v449
        %v510 = vpack.c.b16 %v454, %v450
        %v511 = vpack.c.b16 %v459, %v455
        %v512 = vpack.c.b16 %v460, %v456
        %v513 = vpack.c.b16 %v461, %v457
        %v514 = vpack.c.b16 %v462, %v458
        %v515 = vpack.c.b16 %v467, %v463
        %v516 = vpack.c.b16 %v468, %v464
        %v517 = vpack.c.b16 %v469, %v465
        %v518 = vpack.c.b16 %v470, %v466
        %v519 = vpack.c.b16 %v475, %v471
        %v520 = vpack.c.b16 %v476, %v472
        %v521 = vpack.c.b16 %v477, %v473
        %v522 = vpack.c.b16 %v478, %v474
        %v523 = vpack.c.b16 %v483, %v479
        %v524 = vpack.c.b16 %v484, %v480
        %v525 = vpack.c.b16 %v485, %v481
        %v526 = vpack.c.b16 %v486, %v482
        %v527 = vpack.c.b16 %v491, %v487
        %v528 = vpack.c.b16 %v492, %v488
        %v529 = vpack.c.b16 %v493, %v489
        %v530 = vpack.c.b16 %v494, %v490
        %v531 = vpack.c.b16 %v499, %v495
        %v532 = vpack.c.b16 %v500, %v496
        %v533 = vpack.c.b16 %v501, %v497
        %v534 = vpack.c.b16 %v502, %v498
        %567 = vmatprep.subr.bf16.mxu0 %v504
        %568 = vmatpush1.bf16.msra.mxu0 %v503
        %569 = vmatprep.subr.bf16.mxu0 %v508
        %570 = vmatpush1.bf16.msra.mxu0 %v507
        %571 = vmatprep.subr.bf16.mxu0 %v512
        %572 = vmatpush1.bf16.msra.mxu0 %v511
        %573 = vmatprep.subr.bf16.mxu0 %v516
        %574 = vmatpush1.bf16.msra.mxu0 %v515
        %575 = vmatprep.subr.bf16.mxu0 %v520
        %576 = vmatpush1.bf16.msra.mxu0 %v519
        %577 = vmatprep.subr.bf16.mxu0 %v524
        %578 = vmatpush1.bf16.msra.mxu0 %v523
        %579 = vmatprep.subr.bf16.mxu0 %v528
        %580 = vmatpush1.bf16.msra.mxu0 %v527
        %581 = vmatprep.subr.bf16.mxu0 %v532
        %582 = vmatpush1.bf16.msra.mxu0 %v531
        %583 = vmatprep.subr.bf16.mxu0 0
        %584 = vmatpush1.bf16.msra.mxu0 0
        %585 = vmatprep.subr.bf16.mxu0 0
        %586 = vmatpush1.bf16.msra.mxu0 0
        %587 = vmatprep.subr.bf16.mxu0 0
        %588 = vmatpush1.bf16.msra.mxu0 0
        %589 = vmatprep.subr.bf16.mxu0 0
        %590 = vmatpush1.bf16.msra.mxu0 0
        %591 = vmatprep.subr.bf16.mxu0 0
        %592 = vmatpush1.bf16.msra.mxu0 0
        %593 = vmatprep.subr.bf16.mxu0 0
        %594 = vmatpush1.bf16.msra.mxu0 0
        %595 = vmatprep.subr.bf16.mxu0 0
        %596 = vmatpush1.bf16.msra.mxu0 0
        %597 = vmatprep.subr.bf16.mxu0 0
        %598 = vmatpush1.bf16.msra.mxu0 0
        %599 = vmatprep.mubr.bf16.mxu0 0
        %600 = vmatmul.mubr.bf16.gmra.mrb[0].mxu0 %v385
        %v601 = vpop.f32.mrb[0].mxu0
        %v602 = vadd.f32 %v390, %v601
        %v603 = vpop.f32.mrb[0].mxu0
        %v604 = vadd.f32 %v394, %v603
        %v605 = vpop.f32.mrb[0].mxu0
        %v606 = vpop.f32.mrb[0].mxu0
        %607 = vdwg.mxu0
        %608 = vmatprep.subr.bf16.mxu0 %v506
        %609 = vmatpush1.bf16.msra.mxu0 %v505
        %610 = vmatprep.subr.bf16.mxu0 %v510
        %611 = vmatpush1.bf16.msra.mxu0 %v509
        %612 = vmatprep.subr.bf16.mxu0 %v514
        %613 = vmatpush1.bf16.msra.mxu0 %v513
        %614 = vmatprep.subr.bf16.mxu0 %v518
        %615 = vmatpush1.bf16.msra.mxu0 %v517
        %616 = vmatprep.subr.bf16.mxu0 %v522
        %617 = vmatpush1.bf16.msra.mxu0 %v521
        %618 = vmatprep.subr.bf16.mxu0 %v526
        %619 = vmatpush1.bf16.msra.mxu0 %v525
        %620 = vmatprep.subr.bf16.mxu0 %v530
        %621 = vmatpush1.bf16.msra.mxu0 %v529
        %622 = vmatprep.subr.bf16.mxu0 %v534
        %623 = vmatpush1.bf16.msra.mxu0 %v533
        %624 = vmatprep.subr.bf16.mxu0 0
        %625 = vmatpush1.bf16.msra.mxu0 0
        %626 = vmatprep.subr.bf16.mxu0 0
        %627 = vmatpush1.bf16.msra.mxu0 0
        %628 = vmatprep.subr.bf16.mxu0 0
        %629 = vmatpush1.bf16.msra.mxu0 0
        %630 = vmatprep.subr.bf16.mxu0 0
        %631 = vmatpush1.bf16.msra.mxu0 0
        %632 = vmatprep.subr.bf16.mxu0 0
        %633 = vmatpush1.bf16.msra.mxu0 0
        %634 = vmatprep.subr.bf16.mxu0 0
        %635 = vmatpush1.bf16.msra.mxu0 0
        %636 = vmatprep.subr.bf16.mxu0 0
        %637 = vmatpush1.bf16.msra.mxu0 0
        %638 = vmatprep.subr.bf16.mxu0 0
        %639 = vmatpush1.bf16.msra.mxu0 0
        %640 = vmatprep.mubr.bf16.mxu0 0
        %641 = vmatmul.mubr.bf16.gmra.mrb[0].mxu0 %v385
        %v642 = vpop.f32.mrb[0].mxu0
        %v643 = vadd.f32 %v398, %v642
        %v644 = vpop.f32.mrb[0].mxu0
        %v645 = vadd.f32 %v402, %v644
        %v646 = vpop.f32.mrb[0].mxu0
        %v647 = vpop.f32.mrb[0].mxu0
        %648 = vdwg.mxu0
        %v649 = vmul.f32 %v602, 0.5
        %v650 = vmul.f32 %v604, 0.5
        %v651 = vmul.f32 %v643, 0.5
        %v652 = vmul.f32 %v645, 0.5
        %v653 = vmul.f32 %v602, 0.70710677
        %v654 = vmul.f32 %v604, 0.70710677
        %v655 = vmul.f32 %v643, 0.70710677
        %v656 = vmul.f32 %v645, 0.70710677
        %v657 = verf.f32.pop %v653
        %v658 = verf.f32.pop %v654
        %v659 = verf.f32.pop %v655
        %v660 = verf.f32.pop %v656
        %v661 = vadd.f32 %v657, 1.0
        %v662 = vadd.f32 %v658, 1.0
        %v663 = vadd.f32 %v659, 1.0
        %v664 = vadd.f32 %v660, 1.0
        %v665 = vmul.f32 %v649, %v661
        %v666 = vmul.f32 %v650, %v662
        %v667 = vmul.f32 %v651, %v663
        %v668 = vmul.f32 %v652, %v664
        %v669 = vld [vmem:[%s280] sm:$0xff]
        %v670 = vpack.c.bf16 %v665, %v665
        %v671 = vpack.c.bf16 %v666, %v666
        %v672 = vpack.c.bf16 %v667, %v667
        %v673 = vpack.c.bf16 %v668, %v668
        %v738 = vunpack.c.l.b16 %v320
        %v739 = vunpack.c.l.b16 %v321
        %v740 = vunpack.c.l.b16 %v322
        %v741 = vunpack.c.l.b16 %v323
        %v742 = vunpack.c.l.b16 %v324
        %v743 = vunpack.c.l.b16 %v325
        %v744 = vunpack.c.l.b16 %v326
        %v745 = vunpack.c.l.b16 %v327
        %v746 = vunpack.c.l.b16 %v328
        %v747 = vunpack.c.l.b16 %v329
        %v748 = vunpack.c.l.b16 %v330
        %v749 = vunpack.c.l.b16 %v331
        %v750 = vunpack.c.l.b16 %v332
        %v751 = vunpack.c.l.b16 %v333
        %v752 = vunpack.c.l.b16 %v334
        %v753 = vunpack.c.l.b16 %v335
        %v754 = vunpack.c.l.b16 %v336
        %v755 = vunpack.c.l.b16 %v337
        %v756 = vunpack.c.l.b16 %v338
        %v757 = vunpack.c.l.b16 %v339
        %v758 = vunpack.c.l.b16 %v340
        %v759 = vunpack.c.l.b16 %v341
        %v760 = vunpack.c.l.b16 %v342
        %v761 = vunpack.c.l.b16 %v343
        %v762 = vunpack.c.l.b16 %v344
        %v763 = vunpack.c.l.b16 %v345
        %v764 = vunpack.c.l.b16 %v346
        %v765 = vunpack.c.l.b16 %v347
        %v766 = vunpack.c.l.b16 %v348
        %v767 = vunpack.c.l.b16 %v349
        %v768 = vunpack.c.l.b16 %v350
        %v769 = vunpack.c.l.b16 %v351
        %v770 = vunpack.c.l.b16 %v352
        %v771 = vunpack.c.l.b16 %v353
        %v772 = vunpack.c.l.b16 %v354
        %v773 = vunpack.c.l.b16 %v355
        %v774 = vunpack.c.l.b16 %v356
        %v775 = vunpack.c.l.b16 %v357
        %v776 = vunpack.c.l.b16 %v358
        %v777 = vunpack.c.l.b16 %v359
        %v778 = vunpack.c.l.b16 %v360
        %v779 = vunpack.c.l.b16 %v361
        %v780 = vunpack.c.l.b16 %v362
        %v781 = vunpack.c.l.b16 %v363
        %v782 = vunpack.c.l.b16 %v364
        %v783 = vunpack.c.l.b16 %v365
        %v784 = vunpack.c.l.b16 %v366
        %v785 = vunpack.c.l.b16 %v367
        %v786 = vunpack.c.l.b16 %v368
        %v787 = vunpack.c.l.b16 %v369
        %v788 = vunpack.c.l.b16 %v370
        %v789 = vunpack.c.l.b16 %v371
        %v790 = vunpack.c.l.b16 %v372
        %v791 = vunpack.c.l.b16 %v373
        %v792 = vunpack.c.l.b16 %v374
        %v793 = vunpack.c.l.b16 %v375
        %v794 = vunpack.c.l.b16 %v376
        %v795 = vunpack.c.l.b16 %v377
        %v796 = vunpack.c.l.b16 %v378
        %v797 = vunpack.c.l.b16 %v379
        %v798 = vunpack.c.l.b16 %v380
        %v799 = vunpack.c.l.b16 %v381
        %v800 = vunpack.c.l.b16 %v382
        %v801 = vunpack.c.l.b16 %v383
        %v802 = vpack.c.b16 %v739, %v738
        %v803 = vpack.c.b16 %v741, %v740
        %v804 = vpack.c.b16 %v743, %v742
        %v805 = vpack.c.b16 %v745, %v744
        %v806 = vpack.c.b16 %v747, %v746
        %v807 = vpack.c.b16 %v749, %v748
        %v808 = vpack.c.b16 %v751, %v750
        %v809 = vpack.c.b16 %v753, %v752
        %v810 = vpack.c.b16 %v755, %v754
        %v811 = vpack.c.b16 %v757, %v756
        %v812 = vpack.c.b16 %v759, %v758
        %v813 = vpack.c.b16 %v761, %v760
        %v814 = vpack.c.b16 %v763, %v762
        %v815 = vpack.c.b16 %v765, %v764
        %v816 = vpack.c.b16 %v767, %v766
        %v817 = vpack.c.b16 %v769, %v768
        %v818 = vpack.c.b16 %v771, %v770
        %v819 = vpack.c.b16 %v773, %v772
        %v820 = vpack.c.b16 %v775, %v774
        %v821 = vpack.c.b16 %v777, %v776
        %v822 = vpack.c.b16 %v779, %v778
        %v823 = vpack.c.b16 %v781, %v780
        %v824 = vpack.c.b16 %v783, %v782
        %v825 = vpack.c.b16 %v785, %v784
        %v826 = vpack.c.b16 %v787, %v786
        %v827 = vpack.c.b16 %v789, %v788
        %v828 = vpack.c.b16 %v791, %v790
        %v829 = vpack.c.b16 %v793, %v792
        %v830 = vpack.c.b16 %v795, %v794
        %v831 = vpack.c.b16 %v797, %v796
        %v832 = vpack.c.b16 %v799, %v798
        %v833 = vpack.c.b16 %v801, %v800
        %866 = vmatprep.subr.bf16.mxu0 0
        %867 = vmatpush1.bf16.msra.mxu0 %v802
        %868 = vmatprep.subr.bf16.mxu0 0
        %869 = vmatpush1.bf16.msra.mxu0 %v803
        %870 = vmatprep.subr.bf16.mxu0 0
        %871 = vmatpush1.bf16.msra.mxu0 %v804
        %872 = vmatprep.subr.bf16.mxu0 0
        %873 = vmatpush1.bf16.msra.mxu0 %v805
        %874 = vmatprep.subr.bf16.mxu0 0
        %875 = vmatpush1.bf16.msra.mxu0 %v806
        %876 = vmatprep.subr.bf16.mxu0 0
        %877 = vmatpush1.bf16.msra.mxu0 %v807
        %878 = vmatprep.subr.bf16.mxu0 0
        %879 = vmatpush1.bf16.msra.mxu0 %v808
        %880 = vmatprep.subr.bf16.mxu0 0
        %881 = vmatpush1.bf16.msra.mxu0 %v809
        %882 = vmatprep.subr.bf16.mxu0 0
        %883 = vmatpush1.bf16.msra.mxu0 %v810
        %884 = vmatprep.subr.bf16.mxu0 0
        %885 = vmatpush1.bf16.msra.mxu0 %v811
        %886 = vmatprep.subr.bf16.mxu0 0
        %887 = vmatpush1.bf16.msra.mxu0 %v812
        %888 = vmatprep.subr.bf16.mxu0 0
        %889 = vmatpush1.bf16.msra.mxu0 %v813
        %890 = vmatprep.subr.bf16.mxu0 0
        %891 = vmatpush1.bf16.msra.mxu0 %v814
        %892 = vmatprep.subr.bf16.mxu0 0
        %893 = vmatpush1.bf16.msra.mxu0 %v815
        %894 = vmatprep.subr.bf16.mxu0 0
        %895 = vmatpush1.bf16.msra.mxu0 %v816
        %896 = vmatprep.subr.bf16.mxu0 0
        %897 = vmatpush1.bf16.msra.mxu0 %v817
        %898 = vmatprep.mubr.bf16.mxu0 %v671
        %899 = vmatmul.mubr.bf16.gmra.mrb[0].mxu0 %v670
        %v900 = vpop.f32.mrb[0].mxu0
        %v901 = vadd.f32 0.0, %v900
        %v902 = vpop.f32.mrb[0].mxu0
        %v903 = vpop.f32.mrb[0].mxu0
        %v904 = vpop.f32.mrb[0].mxu0
        %905 = vdwg.mxu0
        %906 = vmatprep.subr.bf16.mxu0 0
        %907 = vmatpush1.bf16.msra.mxu0 %v818
        %908 = vmatprep.subr.bf16.mxu0 0
        %909 = vmatpush1.bf16.msra.mxu0 %v819
        %910 = vmatprep.subr.bf16.mxu0 0
        %911 = vmatpush1.bf16.msra.mxu0 %v820
        %912 = vmatprep.subr.bf16.mxu0 0
        %913 = vmatpush1.bf16.msra.mxu0 %v821
        %914 = vmatprep.subr.bf16.mxu0 0
        %915 = vmatpush1.bf16.msra.mxu0 %v822
        %916 = vmatprep.subr.bf16.mxu0 0
        %917 = vmatpush1.bf16.msra.mxu0 %v823
        %918 = vmatprep.subr.bf16.mxu0 0
        %919 = vmatpush1.bf16.msra.mxu0 %v824
        %920 = vmatprep.subr.bf16.mxu0 0
        %921 = vmatpush1.bf16.msra.mxu0 %v825
        %922 = vmatprep.subr.bf16.mxu0 0
        %923 = vmatpush1.bf16.msra.mxu0 %v826
        %924 = vmatprep.subr.bf16.mxu0 0
        %925 = vmatpush1.bf16.msra.mxu0 %v827
        %926 = vmatprep.subr.bf16.mxu0 0
        %927 = vmatpush1.bf16.msra.mxu0 %v828
        %928 = vmatprep.subr.bf16.mxu0 0
        %929 = vmatpush1.bf16.msra.mxu0 %v829
        %930 = vmatprep.subr.bf16.mxu0 0
        %931 = vmatpush1.bf16.msra.mxu0 %v830
        %932 = vmatprep.subr.bf16.mxu0 0
        %933 = vmatpush1.bf16.msra.mxu0 %v831
        %934 = vmatprep.subr.bf16.mxu0 0
        %935 = vmatpush1.bf16.msra.mxu0 %v832
        %936 = vmatprep.subr.bf16.mxu0 0
        %937 = vmatpush1.bf16.msra.mxu0 %v833
        %938 = vmatprep.mubr.bf16.mxu0 %v673
        %939 = vmatmul.mubr.bf16.gmra.mrb[0].mxu0 %v672
        %v940 = vpop.f32.mrb[0].mxu0
        %v941 = vadd.f32 %v901, %v940
        %v942 = vpop.f32.mrb[0].mxu0
        %v943 = vpop.f32.mrb[0].mxu0
        %v944 = vpop.f32.mrb[0].mxu0
        %945 = vdwg.mxu0
        %v946 = vadd.f32 %v669, %v941
        %947 = vst [vmem:[%s280] sm:$0xff] %v946
        // Predicated region
        $region57: #{mlp_forward.1} parent=39 // pred_check
          %p948 = pneg %p282
        $region58: #{mlp_forward.1} parent=39 // pred_check_branch
          %950 = sbr.rel (%p948) target = $region60
        $region59: #{mlp_forward.1} parent=39 // pred_region
          %v951 = vld [vmem:[%s280] sm:$0xff]
          %v952 = vld [vmem:[%s4] sm:$0x1]
          %v954 = vlaneseq
          %v955 = vshrl.u32 %v954, 7
          %v956 = vsub.s32 0, %v955
          %v957 = vrot.slane %v952, %v956
          %v959 = vadd.f32 %v951, %v957
          %960 = vst [vmem:[%s280] sm:$0xff] %v959
        $region60: #{mlp_forward.1} parent=39 // pred_fallthru
          _
        %s961 = sand.u32 %s153, 1
        %s962 = scalar_lea.sflag [#allocation4], %s961
        %s963 = sand.u32 %s153, 1
        %s964 = smul.addr %s963, 8
        %s965 = scalar_lea.vmem [#allocation8], %s964
        // Predicated region
        $region61: #{mlp_forward.1} parent=39 // pred_check
          %p966 = pneg %p163
        $region62: #{mlp_forward.1} parent=39 // pred_check_branch
          %968 = sbr.rel (%p966) target = $region64
        $region63: #{mlp_forward.1} parent=39 // pred_region
          %s970 = ssub.s32 128, 128
          %971 = vsyncadd %s962, %s970
          %s972 = smul.addr %s27, 128
          %s973 = scalar_lea.hbm %s5, %s972
          %s975 = sshll.u32 %s965, 4
          %s976 = int_to_ptr.vmem [resolvable:$true] %s975
          %978 = dma.vmem_to_hbm [thread:$0]  %s976, 128, %s973, %s962
        $region64: #{mlp_forward.1} parent=39 // pred_fallthru
          _
      $region40: #{mlp_forward.1} parent=5 // pred_fallthru
        _
      %p979 = scmp.le.s32.totalorder 2, %s18
      // Predicated region
      $region65: #{mlp_forward.1} parent=5 // pred_check
        %p980 = pneg %p979
      $region66: #{mlp_forward.1} parent=5 // pred_check_branch
        %982 = sbr.rel (%p980) target = $region68
      $region67: #{mlp_forward.1} parent=5 // pred_region
        %s983 = ssub.s32 %s18, 2
        // Predicated region
        $region69: #{mlp_forward.1} parent=67 // pred_check
          %p984 = pneg %p169
        $region70: #{mlp_forward.1} parent=67 // pred_check_branch
          %986 = sbr.rel (%p984) target = $region72
        $region71: #{mlp_forward.1} parent=67 // pred_region
          %s987 = sand.u32 %s154, 1
          %s988 = scalar_lea.sflag [#allocation4], %s987
          %s989 = sand.u32 %s154, 1
          %s990 = smul.addr %s989, 8
          %s991 = scalar_lea.vmem [#allocation8], %s990
          %992 = dma.done %s988, 128
        $region72: #{mlp_forward.1} parent=67 // pred_fallthru
          _
      $region68: #{mlp_forward.1} parent=5 // pred_fallthru
        _
    $region6: #{mlp_forward.1} parent=1 // loop_footer
      %s22 = sadd.s32 1, %s18
    $region7: #{mlp_forward.1} parent=1 // loop_footer_branch
      %17 = sbr.rel target = $region3
    $region8: #{mlp_forward.1} parent=1 // loop_exit
      _
    %993 = vsyncpa [#allocation3], 1
    %s994 = scalar_lea.sflag [#allocation3], 1
    %995 = vsyncpa %s994, 1
    %996 = vsyncpa [#allocation6], 1
    %997 = vsyncpa [#allocation4], 1
    %s998 = scalar_lea.sflag [#allocation4], 1
    %999 = vsyncpa %s998, 1

</llo_original>
